<compile_context>
chip_gen: v7x
topology: tpu7x:2x2x1
jax: 0.10.0
libtpu: 0.0.40
codegen_flags: <defaults>
</compile_context>

<pallas_src>
import jax
import jax.numpy as jnp
from jax.experimental import pallas as pl
from jax.experimental.pallas import tpu as pltpu

EPS = 1e-5
VMEM_LIMIT = 32 * 1024 * 1024   # explicit scoped-VMEM limit (safe on v5e/v6e/v7x)
VMEM_BUDGET = 24 * 1024 * 1024  # budget used to cap the M tile (v7x-safe)


def _round_up(x, m):
    return (x + m - 1) // m * m


# ----------------------------------------------------------------------------
# Pass 1: tiled GEMM + BN statistics (accumulated in VMEM scratch).
# ----------------------------------------------------------------------------
def make_conv_stats_kernel(m_real):
    inv_m = 1.0 / float(m_real)

    def kernel(p_ref, w_ref, g_ref, b_ref,          # inputs
               y_ref, scale_ref, shift_ref,         # outputs
               s_acc, q_acc):                       # VMEM scratch
        i = pl.program_id(0)

        @pl.when(i == 0)
        def _init():
            s_acc[...] = jnp.zeros_like(s_acc)
            q_acc[...] = jnp.zeros_like(q_acc)

        # (tm, Kp) x (Kp, Cp) on the MXU; bias intentionally omitted (cancels
        # under the subsequent BN mean subtraction).
        y = jnp.dot(p_ref[...], w_ref[...], preferred_element_type=jnp.float32)
        y_ref[...] = y
        s_acc[...] += jnp.sum(y, axis=0, keepdims=True)
        q_acc[...] += jnp.sum(y * y, axis=0, keepdims=True)

        @pl.when(i == pl.num_programs(0) - 1)
        def _finalize():
            mean = s_acc[...] * inv_m
            var = q_acc[...] * inv_m - mean * mean   # biased (training-mode BN)
            inv_std = jax.lax.rsqrt(var + EPS)
            scale = g_ref[...] * inv_std
            scale_ref[...] = scale
            shift_ref[...] = b_ref[...] - mean * scale

    return kernel


# ----------------------------------------------------------------------------
# Pass 2: normalize + affine + ReLU (pure elementwise, lane-dense stores).
# ----------------------------------------------------------------------------
def bn_relu_apply_kernel(y_ref, scale_ref, shift_ref, o_ref):
    o_ref[...] = jnp.maximum(y_ref[...] * scale_ref[...] + shift_ref[...], 0.0)


def _im2col(x_nhwc):
    # (N,H,W,C) -> (N*H*W, 9*C), 3x3 window, padding=1 (SAME). JAX glue only.
    N, H, W, C = x_nhwc.shape
    xp = jnp.pad(x_nhwc, ((0, 0), (1, 1), (1, 1), (0, 0)))
    cols = []
    for ky in range(3):
        for kx in range(3):
            cols.append(xp[:, ky:ky + H, kx:kx + W, :].reshape(N * H * W, C))
    return jnp.concatenate(cols, axis=-1)


def conv_bn_relu(x_nhwc, w, gamma, beta, *, tm=256):
    """3x3 SAME conv + BatchNorm2d (training stats) + ReLU, NHWC in/out."""
    N, H, W, Cin = x_nhwc.shape
    Cout = w.shape[-1]
    M = N * H * W
    K = 9 * Cin
    Kp = _round_up(K, 128)      # MXU-friendly contraction dim
    Cp = _round_up(Cout, 128)   # lane-dense output dim

    # Cap the M tile so double-buffered tiles + weights fit a conservative
    # VMEM budget (re-derived for v7x's smaller VMEM).
    per_row_bytes = 4 * 2 * (Kp + 2 * Cp)
    fixed_bytes = 4 * (Kp * Cp + 6 * Cp)
    tm_cap = max(8, ((VMEM_BUDGET - fixed_bytes) // per_row_bytes // 8) * 8)
    tm = int(max(8, min(tm, tm_cap)))

    Mp = _round_up(M, tm)
    grid_m = Mp // tm

    patches = _im2col(x_nhwc)                                   # (M, K)
    patches = jnp.pad(patches, ((0, Mp - M), (0, Kp - K)))       # zero rows/cols
    w2d = jnp.pad(w.reshape(K, Cout), ((0, Kp - K), (0, Cp - Cout)))
    g = jnp.pad(gamma.reshape(1, Cout), ((0, 0), (0, Cp - Cout)))
    b = jnp.pad(beta.reshape(1, Cout), ((0, 0), (0, Cp - Cout)))

    # ---- pass 1: GEMM + stats (reduction over M-tiles -> "arbitrary") ----
    y_raw, scale, shift = pl.pallas_call(
        make_conv_stats_kernel(M),
        out_shape=(
            jax.ShapeDtypeStruct((Mp, Cp), jnp.float32),
            jax.ShapeDtypeStruct((1, Cp), jnp.float32),
            jax.ShapeDtypeStruct((1, Cp), jnp.float32),
        ),
        grid=(grid_m,),
        in_specs=[
            pl.BlockSpec((tm, Kp), lambda i: (i, 0)),
            pl.BlockSpec((Kp, Cp), lambda i: (0, 0)),
            pl.BlockSpec((1, Cp), lambda i: (0, 0)),
            pl.BlockSpec((1, Cp), lambda i: (0, 0)),
        ],
        out_specs=(
            pl.BlockSpec((tm, Cp), lambda i: (i, 0)),
            pl.BlockSpec((1, Cp), lambda i: (0, 0)),
            pl.BlockSpec((1, Cp), lambda i: (0, 0)),
        ),
        scratch_shapes=[
            pltpu.VMEM((1, Cp), jnp.float32),
            pltpu.VMEM((1, Cp), jnp.float32),
        ],
        compiler_params=pltpu.CompilerParams(
            dimension_semantics=("arbitrary",),
            vmem_limit_bytes=VMEM_LIMIT),
    )(patches, w2d, g, b)

    # ---- pass 2: normalize + ReLU (independent M-tiles -> "parallel") ----
    out = pl.pallas_call(
        bn_relu_apply_kernel,
        out_shape=jax.ShapeDtypeStruct((Mp, Cp), jnp.float32),
        grid=(grid_m,),
        in_specs=[
            pl.BlockSpec((tm, Cp), lambda i: (i, 0)),
            pl.BlockSpec((1, Cp), lambda i: (0, 0)),
            pl.BlockSpec((1, Cp), lambda i: (0, 0)),
        ],
        out_specs=pl.BlockSpec((tm, Cp), lambda i: (i, 0)),
        compiler_params=pltpu.CompilerParams(
            dimension_semantics=("parallel",),
            vmem_limit_bytes=VMEM_LIMIT),
    )(y_raw, scale, shift)

    return out[:M, :Cout].reshape(N, H, W, Cout)


# ----------------------------------------------------------------------------
# Up.forward glue: bilinear x2 upsample (align_corners=True) + pad + concat.
# ----------------------------------------------------------------------------
def _bilinear_up2_align_corners(x):
    # x: (N, H, W, C) -> (N, 2H, 2W, C), PyTorch align_corners=True semantics.
    N, H, W, C = x.shape
    Ho, Wo = 2 * H, 2 * W

    def coords(n_in, n_out):
        if n_in == 1:
            src = jnp.zeros((n_out,), jnp.float32)
        else:
            src = jnp.arange(n_out, dtype=jnp.float32) * (n_in - 1) / (n_out - 1)
        lo = jnp.clip(jnp.floor(src).astype(jnp.int32), 0, n_in - 1)
        hi = jnp.minimum(lo + 1, n_in - 1)
        frac = src - lo.astype(jnp.float32)
        return lo, hi, frac

    y0, y1, wy = coords(H, Ho)
    x0, x1, wx = coords(W, Wo)
    rows = (x[:, y0, :, :] * (1.0 - wy)[None, :, None, None]
            + x[:, y1, :, :] * wy[None, :, None, None])
    return (rows[:, :, x0, :] * (1.0 - wx)[None, None, :, None]
            + rows[:, :, x1, :] * wx[None, None, :, None])


def up_forward(x1_nchw, x2_nchw, params, *, tm=256):
    x1 = jnp.transpose(x1_nchw, (0, 2, 3, 1))     # NCHW -> NHWC
    x2 = jnp.transpose(x2_nchw, (0, 2, 3, 1))
    x1 = _bilinear_up2_align_corners(x1)
    dY = x2.shape[1] - x1.shape[1]
    dX = x2.shape[2] - x1.shape[2]
    x1 = jnp.pad(x1, ((0, 0), (dY // 2, dY - dY // 2),
                      (dX // 2, dX - dX // 2), (0, 0)))
    x = jnp.concatenate([x2, x1], axis=-1)         # torch.cat([x2, x1], dim=1)
    y = conv_bn_relu(x, params["w1"], params["g1"], params["beta1"], tm=tm)
    y = conv_bn_relu(y, params["w2"], params["g2"], params["beta2"], tm=tm)
    return jnp.transpose(y, (0, 3, 1, 2))          # NHWC -> NCHW


# ----------------------------------------------------------------------------
# Pure-JAX reference (includes the conv bias; it cancels under training BN).
# ----------------------------------------------------------------------------
def ref_double_conv(x_nchw, params):
    def stage(x, w, b, g, beta):
        w_oihw = jnp.transpose(w, (3, 2, 0, 1))
        y = jax.lax.conv_general_dilated(
            x, w_oihw, window_strides=(1, 1), padding="SAME",
            dimension_numbers=("NCHW", "OIHW", "NCHW"))
        y = y + b[None, :, None, None]
        m = jnp.mean(y, axis=(0, 2, 3), keepdims=True)
        v = jnp.mean((y - m) ** 2, axis=(0, 2, 3), keepdims=True)
        y = (y - m) * jax.lax.rsqrt(v + EPS)
        y = y * g[None, :, None, None] + beta[None, :, None, None]
        return jnp.maximum(y, 0.0)

    y = stage(x_nchw, params["w1"], params["b1"], params["g1"], params["beta1"])
    y = stage(y, params["w2"], params["b2"], params["g2"], params["beta2"])
    return y


def ref_up(x1_nchw, x2_nchw, params):
    x1 = jnp.transpose(x1_nchw, (0, 2, 3, 1))
    x1 = _bilinear_up2_align_corners(x1)
    x1 = jnp.transpose(x1, (0, 3, 1, 2))
    dY = x2_nchw.shape[2] - x1.shape[2]
    dX = x2_nchw.shape[3] - x1.shape[3]
    x1 = jnp.pad(x1, ((0, 0), (0, 0), (dY // 2, dY - dY // 2),
                      (dX // 2, dX - dX // 2)))
    x = jnp.concatenate([x2_nchw, x1], axis=1)
    return ref_double_conv(x, params)


def init_params(key, in_channels, out_channels):
    ks = jax.random.split(key, 8)
    return {
        "w1": 0.2 * jax.random.normal(ks[0], (3, 3, in_channels, out_channels), jnp.float32),
        "b1": 0.1 * jax.random.normal(ks[1], (out_channels,), jnp.float32),
        "g1": 1.0 + 0.1 * jax.random.normal(ks[2], (out_channels,), jnp.float32),
        "beta1": 0.1 * jax.random.normal(ks[3], (out_channels,), jnp.float32),
        "w2": 0.2 * jax.random.normal(ks[4], (3, 3, out_channels, out_channels), jnp.float32),
        "b2": 0.1 * jax.random.normal(ks[5], (out_channels,), jnp.float32),
        "g2": 1.0 + 0.1 * jax.random.normal(ks[6], (out_channels,), jnp.float32),
        "beta2": 0.1 * jax.random.normal(ks[7], (out_channels,), jnp.float32),
    }


if __name__ == "__main__":
    key = jax.random.PRNGKey(0)
    k1, k2, kp = jax.random.split(key, 3)

    N = 2
    in_channels, out_channels = 8, 8
    H, W = 16, 16
    # Up(in_channels, out_channels): x1 and x2 each carry in_channels//2 chans;
    # x1 is at half spatial resolution and gets upsampled 2x.
    x1 = jax.random.normal(k1, (N, in_channels // 2, H // 2, W // 2), jnp.float32)
    x2 = jax.random.normal(k2, (N, in_channels // 2, H, W), jnp.float32)
    params = init_params(kp, in_channels, out_channels)

    out = jax.jit(up_forward)(x1, x2, params)
    out = jax.block_until_ready(out)
    assert out.shape == (N, out_channels, H, W), out.shape

    ref = ref_up(x1, x2, params)
    if not jnp.allclose(out, ref, atol=2e-3, rtol=2e-3):
        err = float(jnp.max(jnp.abs(out - ref)))
        raise AssertionError(f"Pallas Up deviates from JAX reference (max err {err})")

    print("KERNEL_OK")
</pallas_src>

<mosaic_0001>
module attributes {stable_mosaic.version = 11 : i64} {
  func.func @kernel(%arg0: i32, %arg1: memref<256x128xf32, #tpu.memory_space<vmem>>, %arg2: memref<128x128xf32, #tpu.memory_space<vmem>>, %arg3: memref<1x128xf32, #tpu.memory_space<vmem>>, %arg4: memref<1x128xf32, #tpu.memory_space<vmem>>, %arg5: memref<256x128xf32, #tpu.memory_space<vmem>>, %arg6: memref<1x128xf32, #tpu.memory_space<vmem>>, %arg7: memref<1x128xf32, #tpu.memory_space<vmem>>, %arg8: memref<1x128xf32, #tpu.memory_space<vmem>>, %arg9: memref<1x128xf32, #tpu.memory_space<vmem>>) attributes {dimension_semantics = [#tpu.dimension_semantics<arbitrary>], iteration_bounds = array<i64: 2>, scalar_prefetch = 0 : i64, scratch_operands = 2 : i64, tpu.core_type = #tpu.core_type<tc>, window_params = [{transform_indices = @transform_0, window_bounds = array<i64: 256, 128>}, {pipeline_mode = #tpu.pipeline_mode<synchronous>, transform_indices = @transform_1, window_bounds = array<i64: 128, 128>}, {pipeline_mode = #tpu.pipeline_mode<synchronous>, transform_indices = @transform_2, window_bounds = array<i64: 1, 128>}, {pipeline_mode = #tpu.pipeline_mode<synchronous>, transform_indices = @transform_3, window_bounds = array<i64: 1, 128>}, {transform_indices = @transform_4, window_bounds = array<i64: 256, 128>}, {pipeline_mode = #tpu.pipeline_mode<synchronous>, transform_indices = @transform_5, window_bounds = array<i64: 1, 128>}, {pipeline_mode = #tpu.pipeline_mode<synchronous>, transform_indices = @transform_6, window_bounds = array<i64: 1, 128>}]} {
    %c0_i32 = arith.constant 0 : i32
    %0 = arith.cmpi eq, %arg0, %c0_i32 : i32
    %1 = arith.extui %0 : i1 to i32
    %c0_i32_0 = arith.constant 0 : i32
    %2 = arith.cmpi ne, %1, %c0_i32_0 : i32
    scf.if %2 {
      %cst_17 = arith.constant 0.000000e+00 : f32
      %21 = vector.broadcast %cst_17 : f32 to vector<1x128xf32>
      %c0_18 = arith.constant 0 : index
      %c0_19 = arith.constant 0 : index
      %22 = vector.load %arg8[%c0_18, %c0_19] : memref<1x128xf32, #tpu.memory_space<vmem>>, vector<1x128xf32>
      tpu.vector_store %arg8[%c0_18, %c0_19], %21 {strides = array<i32>} : memref<1x128xf32, #tpu.memory_space<vmem>>, vector<1x128xf32>,
      %cst_20 = arith.constant 0.000000e+00 : f32
      %23 = vector.broadcast %cst_20 : f32 to vector<1x128xf32>
      %c0_21 = arith.constant 0 : index
      %c0_22 = arith.constant 0 : index
      %24 = vector.load %arg9[%c0_21, %c0_22] : memref<1x128xf32, #tpu.memory_space<vmem>>, vector<1x128xf32>
      tpu.vector_store %arg9[%c0_21, %c0_22], %23 {strides = array<i32>} : memref<1x128xf32, #tpu.memory_space<vmem>>, vector<1x128xf32>,
    } else {
    }
    %c0 = arith.constant 0 : index
    %c0_1 = arith.constant 0 : index
    %3 = vector.load %arg1[%c0, %c0_1] : memref<256x128xf32, #tpu.memory_space<vmem>>, vector<256x128xf32>
    %c0_2 = arith.constant 0 : index
    %c0_3 = arith.constant 0 : index
    %4 = vector.load %arg2[%c0_2, %c0_3] : memref<128x128xf32, #tpu.memory_space<vmem>>, vector<128x128xf32>
    %cst = arith.constant dense<0.000000e+00> : vector<256x128xf32>
    %5 = tpu.matmul %3, %4, %cst {dimension_numbers = #tpu.dot_dimension_numbers<[1], [0], [0], [1], [0, 0, 1, 1], [], []>} : vector<256x128xf32>, vector<128x128xf32>, vector<256x128xf32> -> vector<256x128xf32>
    %c0_4 = arith.constant 0 : index
    %c0_5 = arith.constant 0 : index
    %6 = vector.load %arg5[%c0_4, %c0_5] : memref<256x128xf32, #tpu.memory_space<vmem>>, vector<256x128xf32>
    tpu.vector_store %arg5[%c0_4, %c0_5], %5 {strides = array<i32>} : memref<256x128xf32, #tpu.memory_space<vmem>>, vector<256x128xf32>,
    %c0_6 = arith.constant 0 : index
    %c0_7 = arith.constant 0 : index
    %7 = vector.load %arg8[%c0_6, %c0_7] : memref<1x128xf32, #tpu.memory_space<vmem>>, vector<1x128xf32>
    %cst_8 = arith.constant dense<0.000000e+00> : vector<128xf32>
    %8 = vector.multi_reduction <add>, %5, %cst_8 [0] : vector<256x128xf32> to vector<128xf32>
    %9 = vector.shape_cast %8 : vector<128xf32> to vector<1x128xf32>
    %10 = arith.addf %7, %9 : vector<1x128xf32>
    %c0_9 = arith.constant 0 : index
    %c0_10 = arith.constant 0 : index
    %11 = vector.load %arg8[%c0_9, %c0_10] : memref<1x128xf32, #tpu.memory_space<vmem>>, vector<1x128xf32>
    tpu.vector_store %arg8[%c0_9, %c0_10], %10 {strides = array<i32>} : memref<1x128xf32, #tpu.memory_space<vmem>>, vector<1x128xf32>,
    %c0_11 = arith.constant 0 : index
    %c0_12 = arith.constant 0 : index
    %12 = vector.load %arg9[%c0_11, %c0_12] : memref<1x128xf32, #tpu.memory_space<vmem>>, vector<1x128xf32>
    %13 = arith.mulf %5, %5 : vector<256x128xf32>
    %cst_13 = arith.constant dense<0.000000e+00> : vector<128xf32>
    %14 = vector.multi_reduction <add>, %13, %cst_13 [0] : vector<256x128xf32> to vector<128xf32>
    %15 = vector.shape_cast %14 : vector<128xf32> to vector<1x128xf32>
    %16 = arith.addf %12, %15 : vector<1x128xf32>
    %c0_14 = arith.constant 0 : index
    %c0_15 = arith.constant 0 : index
    %17 = vector.load %arg9[%c0_14, %c0_15] : memref<1x128xf32, #tpu.memory_space<vmem>>, vector<1x128xf32>
    tpu.vector_store %arg9[%c0_14, %c0_15], %16 {strides = array<i32>} : memref<1x128xf32, #tpu.memory_space<vmem>>, vector<1x128xf32>,
    %c1_i32 = arith.constant 1 : i32
    %18 = arith.cmpi eq, %arg0, %c1_i32 : i32
    %19 = arith.extui %18 : i1 to i32
    %c0_i32_16 = arith.constant 0 : i32
    %20 = arith.cmpi ne, %19, %c0_i32_16 : i32
    scf.if %20 {
      %c0_17 = arith.constant 0 : index
      %c0_18 = arith.constant 0 : index
      %21 = vector.load %arg8[%c0_17, %c0_18] : memref<1x128xf32, #tpu.memory_space<vmem>>, vector<1x128xf32>
      %cst_19 = arith.constant 0.001953125 : f32
      %22 = vector.broadcast %cst_19 : f32 to vector<1x128xf32>
      %23 = arith.mulf %21, %22 : vector<1x128xf32>
      %c0_20 = arith.constant 0 : index
      %c0_21 = arith.constant 0 : index
      %24 = vector.load %arg9[%c0_20, %c0_21] : memref<1x128xf32, #tpu.memory_space<vmem>>, vector<1x128xf32>
      %cst_22 = arith.constant 0.001953125 : f32
      %25 = vector.broadcast %cst_22 : f32 to vector<1x128xf32>
      %26 = arith.mulf %24, %25 : vector<1x128xf32>
      %27 = arith.mulf %23, %23 : vector<1x128xf32>
      %28 = arith.subf %26, %27 : vector<1x128xf32>
      %cst_23 = arith.constant 9.99999974E-6 : f32
      %29 = vector.broadcast %cst_23 : f32 to vector<1x128xf32>
      %30 = arith.addf %28, %29 : vector<1x128xf32>
      %31 = math.rsqrt %30 : vector<1x128xf32>
      %c0_24 = arith.constant 0 : index
      %c0_25 = arith.constant 0 : index
      %32 = vector.load %arg3[%c0_24, %c0_25] : memref<1x128xf32, #tpu.memory_space<vmem>>, vector<1x128xf32>
      %33 = arith.mulf %32, %31 : vector<1x128xf32>
      %c0_26 = arith.constant 0 : index
      %c0_27 = arith.constant 0 : index
      %34 = vector.load %arg6[%c0_26, %c0_27] : memref<1x128xf32, #tpu.memory_space<vmem>>, vector<1x128xf32>
      tpu.vector_store %arg6[%c0_26, %c0_27], %33 {strides = array<i32>} : memref<1x128xf32, #tpu.memory_space<vmem>>, vector<1x128xf32>,
      %c0_28 = arith.constant 0 : index
      %c0_29 = arith.constant 0 : index
      %35 = vector.load %arg4[%c0_28, %c0_29] : memref<1x128xf32, #tpu.memory_space<vmem>>, vector<1x128xf32>
      %36 = arith.mulf %23, %33 : vector<1x128xf32>
      %37 = arith.subf %35, %36 : vector<1x128xf32>
      %c0_30 = arith.constant 0 : index
      %c0_31 = arith.constant 0 : index
      %38 = vector.load %arg7[%c0_30, %c0_31] : memref<1x128xf32, #tpu.memory_space<vmem>>, vector<1x128xf32>
      tpu.vector_store %arg7[%c0_30, %c0_31], %37 {strides = array<i32>} : memref<1x128xf32, #tpu.memory_space<vmem>>, vector<1x128xf32>,
    } else {
    }
    return
  }
  func.func @transform_0(%arg0: i32) -> (i32, i32) {
    %c0_i32 = arith.constant 0 : i32
    %c0_i32_0 = arith.constant 0 : i32
    return %arg0, %c0_i32 : i32, i32
  }
  func.func @transform_1(%arg0: i32) -> (i32, i32) {
    %c0_i32 = arith.constant 0 : i32
    %c0_i32_0 = arith.constant 0 : i32
    %c0_i32_1 = arith.constant 0 : i32
    return %c0_i32, %c0_i32_0 : i32, i32
  }
  func.func @transform_2(%arg0: i32) -> (i32, i32) {
    %c0_i32 = arith.constant 0 : i32
    %c0_i32_0 = arith.constant 0 : i32
    %c0_i32_1 = arith.constant 0 : i32
    return %c0_i32, %c0_i32_0 : i32, i32
  }
  func.func @transform_3(%arg0: i32) -> (i32, i32) {
    %c0_i32 = arith.constant 0 : i32
    %c0_i32_0 = arith.constant 0 : i32
    %c0_i32_1 = arith.constant 0 : i32
    return %c0_i32, %c0_i32_0 : i32, i32
  }
  func.func @transform_4(%arg0: i32) -> (i32, i32) {
    %c0_i32 = arith.constant 0 : i32
    %c0_i32_0 = arith.constant 0 : i32
    return %arg0, %c0_i32 : i32, i32
  }
  func.func @transform_5(%arg0: i32) -> (i32, i32) {
    %c0_i32 = arith.constant 0 : i32
    %c0_i32_0 = arith.constant 0 : i32
    %c0_i32_1 = arith.constant 0 : i32
    return %c0_i32, %c0_i32_0 : i32, i32
  }
  func.func @transform_6(%arg0: i32) -> (i32, i32) {
    %c0_i32 = arith.constant 0 : i32
    %c0_i32_0 = arith.constant 0 : i32
    %c0_i32_1 = arith.constant 0 : i32
    return %c0_i32, %c0_i32_0 : i32, i32
  }
}

module attributes {stable_mosaic.version = 11 : i64} {
  func.func @bn_relu_apply_kernel(%arg0: i32, %arg1: memref<256x128xf32, #tpu.memory_space<vmem>>, %arg2: memref<1x128xf32, #tpu.memory_space<vmem>>, %arg3: memref<1x128xf32, #tpu.memory_space<vmem>>, %arg4: memref<256x128xf32, #tpu.memory_space<vmem>>) attributes {dimension_semantics = [#tpu.dimension_semantics<parallel>], iteration_bounds = array<i64: 2>, scalar_prefetch = 0 : i64, scratch_operands = 0 : i64, tpu.core_type = #tpu.core_type<tc>, window_params = [{transform_indices = @transform_0, window_bounds = array<i64: 256, 128>}, {pipeline_mode = #tpu.pipeline_mode<synchronous>, transform_indices = @transform_1, window_bounds = array<i64: 1, 128>}, {pipeline_mode = #tpu.pipeline_mode<synchronous>, transform_indices = @transform_2, window_bounds = array<i64: 1, 128>}, {transform_indices = @transform_3, window_bounds = array<i64: 256, 128>}]} {
    %c0 = arith.constant 0 : index
    %c0_0 = arith.constant 0 : index
    %0 = vector.load %arg1[%c0, %c0_0] : memref<256x128xf32, #tpu.memory_space<vmem>>, vector<256x128xf32>
    %c0_1 = arith.constant 0 : index
    %c0_2 = arith.constant 0 : index
    %1 = vector.load %arg2[%c0_1, %c0_2] : memref<1x128xf32, #tpu.memory_space<vmem>>, vector<1x128xf32>
    %2 = vector.broadcast %1 : vector<1x128xf32> to vector<256x128xf32>
    %3 = arith.mulf %0, %2 : vector<256x128xf32>
    %c0_3 = arith.constant 0 : index
    %c0_4 = arith.constant 0 : index
    %4 = vector.load %arg3[%c0_3, %c0_4] : memref<1x128xf32, #tpu.memory_space<vmem>>, vector<1x128xf32>
    %5 = vector.broadcast %4 : vector<1x128xf32> to vector<256x128xf32>
    %6 = arith.addf %3, %5 : vector<256x128xf32>
    %cst = arith.constant 0.000000e+00 : f32
    %7 = vector.broadcast %cst : f32 to vector<256x128xf32>
    %8 = arith.maximumf %6, %7 : vector<256x128xf32>
    %c0_5 = arith.constant 0 : index
    %c0_6 = arith.constant 0 : index
    %9 = vector.load %arg4[%c0_5, %c0_6] : memref<256x128xf32, #tpu.memory_space<vmem>>, vector<256x128xf32>
    tpu.vector_store %arg4[%c0_5, %c0_6], %8 {strides = array<i32>} : memref<256x128xf32, #tpu.memory_space<vmem>>, vector<256x128xf32>,
    return
  }
  func.func @transform_0(%arg0: i32) -> (i32, i32) {
    %c0_i32 = arith.constant 0 : i32
    %c0_i32_0 = arith.constant 0 : i32
    return %arg0, %c0_i32 : i32, i32
  }
  func.func @transform_1(%arg0: i32) -> (i32, i32) {
    %c0_i32 = arith.constant 0 : i32
    %c0_i32_0 = arith.constant 0 : i32
    %c0_i32_1 = arith.constant 0 : i32
    return %c0_i32, %c0_i32_0 : i32, i32
  }
  func.func @transform_2(%arg0: i32) -> (i32, i32) {
    %c0_i32 = arith.constant 0 : i32
    %c0_i32_0 = arith.constant 0 : i32
    %c0_i32_1 = arith.constant 0 : i32
    return %c0_i32, %c0_i32_0 : i32, i32
  }
  func.func @transform_3(%arg0: i32) -> (i32, i32) {
    %c0_i32 = arith.constant 0 : i32
    %c0_i32_0 = arith.constant 0 : i32
    return %arg0, %c0_i32 : i32, i32
  }
}

</mosaic_0001>

<llo_original>
// kernel: up_forward.5
$region0: #{up_forward.5}
  #allocation0 [shape = 'u32[]', space=smem, size = 0x4, offset = 0x4, fixed_abs, tag = 'smem constant byte address 0x4 - core index']
  #allocation1 [shape = 'u32[144,128]{1,0:T(1,128)}', space=vmem, size = 0x12000, scoped, tag = 'internal scratch']
  %s0 = inlined_call_operand.vmem [shape: f32[512,128], index: 0, kind: input, shape index: {}]
  %s1 = inlined_call_operand.vmem [shape: f32[1,128], index: 1, kind: input, shape index: {}]
  %s2 = inlined_call_operand.vmem [shape: f32[1,128], index: 2, kind: input, shape index: {}]
  %s3 = inlined_call_operand.vmem [shape: f32[512,128], index: 3, kind: output, shape index: {}]
  %s4 = sld [smem:[#allocation0]]
  $region45: #{up_forward.5} parent=0
    _
  %s6 = ssub.s32 1, %s4
  %s7 = scalar_select 0, %s6, %s4
  loop: start=0, step=1, limit=4
  $region2: #{up_forward.5} parent=0 // loop_pre_header
    _
  $region3: #{up_forward.5} parent=0 // loop_header
    %s9 = sphi 0, %s13
    %p10 = scmp.ge.s32.totalorder %s9, 4
    %s19 = sphi 0, %s21
    %s22 = sphi 0, %s19
    %s23 = sphi 0, %s22
    %s39 = sphi 0, %s23
    %s43 = sphi 0, %s43
    %s45 = sphi 0, %s43
    %s46 = sphi 0, %s45
    %s60 = sphi 0, %s46
    %s64 = sphi 0, %s64
    %s66 = sphi 0, %s64
    %s67 = sphi 0, %s66
    %s81 = sphi 0, %s67
    %s87 = sphi 0, %s89
    %s90 = sphi 0, %s87
    %s91 = sphi 0, %s90
    %s107 = sphi 0, %s91
  $region4: #{up_forward.5} parent=0 // loop_header_branch
    %12 = sbr.rel (%p10) target = $region8
  $region5: #{up_forward.5} parent=0 // loop_body
    %s14 = ssub.s32 %s9, 1
    %s15 = ssub.s32 %s9, 2
    %s16 = sadd.s32 %s9, 1
    %s17 = ssub.s32 %s9, %s16
    %p18 = scmp.eq.s32.totalorder %s17, 0
    %s20 = sadd.s32 %s19, 1
    %s21 = scalar_select %p18, %s19, %s20
    %p24 = pneg %p18
    %p25 = scmp.eq.s32.totalorder %s9, 1
    %p26 = por %p24, %p25
    %p27 = scmp.ne.s32.totalorder %s19, %s22
    %p28 = scmp.eq.s32.totalorder %s9, 0
    %p29 = por %p27, %p28
    %p30 = scmp.ne.s32.totalorder %s19, %s22
    %p31 = scmp.eq.s32.totalorder %s14, 1
    %p32 = por %p30, %p31
    %p33 = scmp.ne.s32.totalorder %s22, %s23
    %p34 = scmp.eq.s32.totalorder %s14, 0
    %p35 = por %p33, %p34
    %p36 = scmp.ne.s32.totalorder %s22, %s23
    %p37 = scmp.eq.s32.totalorder %s15, 1
    %p38 = por %p36, %p37
    %p40 = scmp.ne.s32.totalorder %s23, %s39
    %p41 = scmp.eq.s32.totalorder %s15, 0
    %p42 = por %p40, %p41
    %s44 = sadd.s32 %s43, 1
    %p47 = scmp.eq.s32.totalorder %s9, 1
    %p48 = scmp.ne.s32.totalorder %s43, %s45
    %p49 = scmp.eq.s32.totalorder %s9, 0
    %p50 = por %p48, %p49
    %p51 = scmp.ne.s32.totalorder %s43, %s45
    %p52 = scmp.eq.s32.totalorder %s14, 1
    %p53 = por %p51, %p52
    %p54 = scmp.ne.s32.totalorder %s45, %s46
    %p55 = scmp.eq.s32.totalorder %s14, 0
    %p56 = por %p54, %p55
    %p57 = scmp.ne.s32.totalorder %s45, %s46
    %p58 = scmp.eq.s32.totalorder %s15, 1
    %p59 = por %p57, %p58
    %p61 = scmp.ne.s32.totalorder %s46, %s60
    %p62 = scmp.eq.s32.totalorder %s15, 0
    %p63 = por %p61, %p62
    %s65 = sadd.s32 %s64, 1
    %p68 = scmp.eq.s32.totalorder %s9, 1
    %p69 = scmp.ne.s32.totalorder %s64, %s66
    %p70 = scmp.eq.s32.totalorder %s9, 0
    %p71 = por %p69, %p70
    %p72 = scmp.ne.s32.totalorder %s64, %s66
    %p73 = scmp.eq.s32.totalorder %s14, 1
    %p74 = por %p72, %p73
    %p75 = scmp.ne.s32.totalorder %s66, %s67
    %p76 = scmp.eq.s32.totalorder %s14, 0
    %p77 = por %p75, %p76
    %p78 = scmp.ne.s32.totalorder %s66, %s67
    %p79 = scmp.eq.s32.totalorder %s15, 1
    %p80 = por %p78, %p79
    %p82 = scmp.ne.s32.totalorder %s67, %s81
    %p83 = scmp.eq.s32.totalorder %s15, 0
    %p84 = por %p82, %p83
    %s85 = ssub.s32 %s9, %s16
    %p86 = scmp.eq.s32.totalorder %s85, 0
    %s88 = sadd.s32 %s87, 1
    %s89 = scalar_select %p86, %s87, %s88
    %p92 = pneg %p86
    %p93 = scmp.eq.s32.totalorder %s9, 1
    %p94 = por %p92, %p93
    %p95 = scmp.ne.s32.totalorder %s87, %s90
    %p96 = scmp.eq.s32.totalorder %s9, 0
    %p97 = por %p95, %p96
    %p98 = scmp.ne.s32.totalorder %s87, %s90
    %p99 = scmp.eq.s32.totalorder %s14, 1
    %p100 = por %p98, %p99
    %p101 = scmp.ne.s32.totalorder %s90, %s91
    %p102 = scmp.eq.s32.totalorder %s14, 0
    %p103 = por %p101, %p102
    %p104 = scmp.ne.s32.totalorder %s90, %s91
    %p105 = scmp.eq.s32.totalorder %s15, 1
    %p106 = por %p104, %p105
    %p108 = scmp.ne.s32.totalorder %s91, %s107
    %p109 = scmp.eq.s32.totalorder %s15, 0
    %p110 = por %p108, %p109
    %p111 = scmp.le.s32.totalorder 1, %s9
    %p112 = scmp.lt.s32.totalorder %s9, 3
    %p113 = pnand %p111, %p112
    %p114 = pneg %p113
    // Predicated region
    $region9: #{up_forward.5} parent=5 // pred_check
      _
    $region10: #{up_forward.5} parent=5 // pred_check_branch
      %116 = sbr.rel (%p113) target = $region12
    $region11: #{up_forward.5} parent=5 // pred_region
      %s117 = ssub.s32 %s9, 1
      // Predicated region
      $region13: #{up_forward.5} parent=11 // pred_check
        %p118 = pneg %p56
      $region14: #{up_forward.5} parent=11 // pred_check_branch
        %120 = sbr.rel (%p118) target = $region16
      $region15: #{up_forward.5} parent=11 // pred_region
        _
      $region16: #{up_forward.5} parent=11 // pred_fallthru
        _
      // Predicated region
      $region17: #{up_forward.5} parent=11 // pred_check
        %p121 = pneg %p77
      $region18: #{up_forward.5} parent=11 // pred_check_branch
        %123 = sbr.rel (%p121) target = $region20
      $region19: #{up_forward.5} parent=11 // pred_region
        _
      $region20: #{up_forward.5} parent=11 // pred_fallthru
        _
    $region12: #{up_forward.5} parent=5 // pred_fallthru
      _
    %p124 = scmp.lt.s32.totalorder %s9, 2
    // Predicated region
    $region21: #{up_forward.5} parent=5 // pred_check
      %p125 = pneg %p124
    $region22: #{up_forward.5} parent=5 // pred_check_branch
      %127 = sbr.rel (%p125) target = $region24
    $region23: #{up_forward.5} parent=5 // pred_region
      // Predicated region
      $region25: #{up_forward.5} parent=23 // pred_check
        %p128 = pneg %p29
      $region26: #{up_forward.5} parent=23 // pred_check_branch
        %130 = sbr.rel (%p128) target = $region28
      $region27: #{up_forward.5} parent=23 // pred_region
        %s131 = smul.u32 32, %s9
        %p132 = scmp.lt.s32.totalorder %s131, 63
        %s133 = scalar_select %p132, %s131, 63
        %s134 = smul.addr %s133, 8
        %s135 = scalar_lea.vmem %s0, %s134
        %s136 = smul.u32 32, %s9
      $region28: #{up_forward.5} parent=23 // pred_fallthru
        _
    $region24: #{up_forward.5} parent=5 // pred_fallthru
      _
    %p137 = scmp.le.s32.totalorder 1, %s9
    %p138 = scmp.lt.s32.totalorder %s9, 3
    %p139 = pnand %p137, %p138
    %p140 = pneg %p139
    // Predicated region
    $region29: #{up_forward.5} parent=5 // pred_check
      _
    $region30: #{up_forward.5} parent=5 // pred_check_branch
      %142 = sbr.rel (%p139) target = $region32
    $region31: #{up_forward.5} parent=5 // pred_region
      %s143 = ssub.s32 %s9, 1
      %s144 = smul.u32 32, %s14
      %p145 = scmp.lt.s32.totalorder %s144, 63
      %s146 = scalar_select %p145, %s144, 63
      %s147 = smul.addr %s146, 8
      %s148 = scalar_lea.vmem %s0, %s147
      %p149 = pneg %p35
      %p150 = pneg %p32
      %p151 = pneg %p56
      %p152 = pneg %p53
      %p153 = pneg %p77
      %p154 = pneg %p74
      %p155 = pneg %p103
      %p156 = pneg %p100
      %s157 = smul.u32 32, %s14
      %p158 = scmp.lt.s32.totalorder %s157, 63
      %s159 = scalar_select %p158, %s157, 63
      %s160 = smul.addr %s159, 8
      %s161 = scalar_lea.vmem %s3, %s160
      %s162 = smul.u32 32, %s14
      %p163 = scmp.lt.s32.totalorder %s162, 63
      %s164 = scalar_select %p163, %s162, 63
      %s165 = smul.addr %s164, 8
      %s166 = scalar_lea.vmem %s0, %s165
      %s167 = smul.u32 32, %s14
      %s168 = smul.u32 32, %s14
      %p169 = scmp.lt.s32.totalorder %s168, 63
      %s170 = scalar_select %p169, %s168, 63
      %s171 = smul.addr %s170, 8
      %s172 = scalar_lea.vmem %s3, %s171
      %s173 = smul.u32 32, %s14
      %v174 = vld [vmem:[%s166] sm:$0xff]
      %v175 = vld [vmem:[%s166 + $0x8] sm:$0xff]
      %v176 = vld [vmem:[%s166 + $0x10] sm:$0xff]
      %v177 = vld [vmem:[%s166 + $0x18] sm:$0xff]
      %v178 = vld [vmem:[%s166 + $0x20] sm:$0xff]
      %v179 = vld [vmem:[%s166 + $0x28] sm:$0xff]
      %v180 = vld [vmem:[%s166 + $0x30] sm:$0xff]
      %v181 = vld [vmem:[%s166 + $0x38] sm:$0xff]
      %v182 = vld [vmem:[%s166 + $0x40] sm:$0xff]
      %v183 = vld [vmem:[%s166 + $0x48] sm:$0xff]
      %v184 = vld [vmem:[%s166 + $0x50] sm:$0xff]
      %v185 = vld [vmem:[%s166 + $0x58] sm:$0xff]
      %v186 = vld [vmem:[%s166 + $0x60] sm:$0xff]
      %v187 = vld [vmem:[%s166 + $0x68] sm:$0xff]
      %v188 = vld [vmem:[%s166 + $0x70] sm:$0xff]
      %v189 = vld [vmem:[%s166 + $0x78] sm:$0xff]
      %v190 = vld [vmem:[%s166 + $0x80] sm:$0xff]
      %v191 = vld [vmem:[%s166 + $0x88] sm:$0xff]
      %v192 = vld [vmem:[%s166 + $0x90] sm:$0xff]
      %v193 = vld [vmem:[%s166 + $0x98] sm:$0xff]
      %v194 = vld [vmem:[%s166 + $0xa0] sm:$0xff]
      %v195 = vld [vmem:[%s166 + $0xa8] sm:$0xff]
      %v196 = vld [vmem:[%s166 + $0xb0] sm:$0xff]
      %v197 = vld [vmem:[%s166 + $0xb8] sm:$0xff]
      %v198 = vld [vmem:[%s166 + $0xc0] sm:$0xff]
      %v199 = vld [vmem:[%s166 + $0xc8] sm:$0xff]
      %v200 = vld [vmem:[%s166 + $0xd0] sm:$0xff]
      %v201 = vld [vmem:[%s166 + $0xd8] sm:$0xff]
      %v202 = vld [vmem:[%s166 + $0xe0] sm:$0xff]
      %v203 = vld [vmem:[%s166 + $0xe8] sm:$0xff]
      %v204 = vld [vmem:[%s166 + $0xf0] sm:$0xff]
      %v205 = vld [vmem:[%s166 + $0xf8] sm:$0xff]
      %v206 = vld [vmem:[%s1] sm:$0x1]
      %v208 = vlaneseq
      %v209 = vshrl.u32 %v208, 7
      %v210 = vsub.s32 0, %v209
      %v211 = vrot.slane %v206, %v210
      %v213 = vmul.f32 %v174, %v211
      %v214 = vmul.f32 %v175, %v211
      %v215 = vmul.f32 %v176, %v211
      %v216 = vmul.f32 %v177, %v211
      %v217 = vmul.f32 %v178, %v211
      %v218 = vmul.f32 %v179, %v211
      %v219 = vmul.f32 %v180, %v211
      %v220 = vmul.f32 %v181, %v211
      %v221 = vmul.f32 %v182, %v211
      %v222 = vmul.f32 %v183, %v211
      %v223 = vmul.f32 %v184, %v211
      %v224 = vmul.f32 %v185, %v211
      %v225 = vmul.f32 %v186, %v211
      %v226 = vmul.f32 %v187, %v211
      %v227 = vmul.f32 %v188, %v211
      %v228 = vmul.f32 %v189, %v211
      %v229 = vmul.f32 %v190, %v211
      %v230 = vmul.f32 %v191, %v211
      %v231 = vmul.f32 %v192, %v211
      %v232 = vmul.f32 %v193, %v211
      %v233 = vmul.f32 %v194, %v211
      %v234 = vmul.f32 %v195, %v211
      %v235 = vmul.f32 %v196, %v211
      %v236 = vmul.f32 %v197, %v211
      %v237 = vmul.f32 %v198, %v211
      %v238 = vmul.f32 %v199, %v211
      %v239 = vmul.f32 %v200, %v211
      %v240 = vmul.f32 %v201, %v211
      %v241 = vmul.f32 %v202, %v211
      %v242 = vmul.f32 %v203, %v211
      %v243 = vmul.f32 %v204, %v211
      %v244 = vmul.f32 %v205, %v211
      %v245 = vld [vmem:[%s2] sm:$0x1]
      %v247 = vlaneseq
      %v248 = vshrl.u32 %v247, 7
      %v249 = vsub.s32 0, %v248
      %v250 = vrot.slane %v245, %v249
      %v252 = vadd.f32 %v213, %v250
      %v253 = vadd.f32 %v214, %v250
      %v254 = vadd.f32 %v215, %v250
      %v255 = vadd.f32 %v216, %v250
      %v256 = vadd.f32 %v217, %v250
      %v257 = vadd.f32 %v218, %v250
      %v258 = vadd.f32 %v219, %v250
      %v259 = vadd.f32 %v220, %v250
      %v260 = vadd.f32 %v221, %v250
      %v261 = vadd.f32 %v222, %v250
      %v262 = vadd.f32 %v223, %v250
      %v263 = vadd.f32 %v224, %v250
      %v264 = vadd.f32 %v225, %v250
      %v265 = vadd.f32 %v226, %v250
      %v266 = vadd.f32 %v227, %v250
      %v267 = vadd.f32 %v228, %v250
      %v268 = vadd.f32 %v229, %v250
      %v269 = vadd.f32 %v230, %v250
      %v270 = vadd.f32 %v231, %v250
      %v271 = vadd.f32 %v232, %v250
      %v272 = vadd.f32 %v233, %v250
      %v273 = vadd.f32 %v234, %v250
      %v274 = vadd.f32 %v235, %v250
      %v275 = vadd.f32 %v236, %v250
      %v276 = vadd.f32 %v237, %v250
      %v277 = vadd.f32 %v238, %v250
      %v278 = vadd.f32 %v239, %v250
      %v279 = vadd.f32 %v240, %v250
      %v280 = vadd.f32 %v241, %v250
      %v281 = vadd.f32 %v242, %v250
      %v282 = vadd.f32 %v243, %v250
      %v283 = vadd.f32 %v244, %v250
      %v284 = vmax.f32 %v252, 0.0
      %v285 = vmax.f32 %v253, 0.0
      %v286 = vmax.f32 %v254, 0.0
      %v287 = vmax.f32 %v255, 0.0
      %v288 = vmax.f32 %v256, 0.0
      %v289 = vmax.f32 %v257, 0.0
      %v290 = vmax.f32 %v258, 0.0
      %v291 = vmax.f32 %v259, 0.0
      %v292 = vmax.f32 %v260, 0.0
      %v293 = vmax.f32 %v261, 0.0
      %v294 = vmax.f32 %v262, 0.0
      %v295 = vmax.f32 %v263, 0.0
      %v296 = vmax.f32 %v264, 0.0
      %v297 = vmax.f32 %v265, 0.0
      %v298 = vmax.f32 %v266, 0.0
      %v299 = vmax.f32 %v267, 0.0
      %v300 = vmax.f32 %v268, 0.0
      %v301 = vmax.f32 %v269, 0.0
      %v302 = vmax.f32 %v270, 0.0
      %v303 = vmax.f32 %v271, 0.0
      %v304 = vmax.f32 %v272, 0.0
      %v305 = vmax.f32 %v273, 0.0
      %v306 = vmax.f32 %v274, 0.0
      %v307 = vmax.f32 %v275, 0.0
      %v308 = vmax.f32 %v276, 0.0
      %v309 = vmax.f32 %v277, 0.0
      %v310 = vmax.f32 %v278, 0.0
      %v311 = vmax.f32 %v279, 0.0
      %v312 = vmax.f32 %v280, 0.0
      %v313 = vmax.f32 %v281, 0.0
      %v314 = vmax.f32 %v282, 0.0
      %v315 = vmax.f32 %v283, 0.0
      %316 = vst [vmem:[%s172] sm:$0xff] %v284
      %317 = vst [vmem:[%s172 + $0x8] sm:$0xff] %v285
      %318 = vst [vmem:[%s172 + $0x10] sm:$0xff] %v286
      %319 = vst [vmem:[%s172 + $0x18] sm:$0xff] %v287
      %320 = vst [vmem:[%s172 + $0x20] sm:$0xff] %v288
      %321 = vst [vmem:[%s172 + $0x28] sm:$0xff] %v289
      %322 = vst [vmem:[%s172 + $0x30] sm:$0xff] %v290
      %323 = vst [vmem:[%s172 + $0x38] sm:$0xff] %v291
      %324 = vst [vmem:[%s172 + $0x40] sm:$0xff] %v292
      %325 = vst [vmem:[%s172 + $0x48] sm:$0xff] %v293
      %326 = vst [vmem:[%s172 + $0x50] sm:$0xff] %v294
      %327 = vst [vmem:[%s172 + $0x58] sm:$0xff] %v295
      %328 = vst [vmem:[%s172 + $0x60] sm:$0xff] %v296
      %329 = vst [vmem:[%s172 + $0x68] sm:$0xff] %v297
      %330 = vst [vmem:[%s172 + $0x70] sm:$0xff] %v298
      %331 = vst [vmem:[%s172 + $0x78] sm:$0xff] %v299
      %332 = vst [vmem:[%s172 + $0x80] sm:$0xff] %v300
      %333 = vst [vmem:[%s172 + $0x88] sm:$0xff] %v301
      %334 = vst [vmem:[%s172 + $0x90] sm:$0xff] %v302
      %335 = vst [vmem:[%s172 + $0x98] sm:$0xff] %v303
      %336 = vst [vmem:[%s172 + $0xa0] sm:$0xff] %v304
      %337 = vst [vmem:[%s172 + $0xa8] sm:$0xff] %v305
      %338 = vst [vmem:[%s172 + $0xb0] sm:$0xff] %v306
      %339 = vst [vmem:[%s172 + $0xb8] sm:$0xff] %v307
      %340 = vst [vmem:[%s172 + $0xc0] sm:$0xff] %v308
      %341 = vst [vmem:[%s172 + $0xc8] sm:$0xff] %v309
      %342 = vst [vmem:[%s172 + $0xd0] sm:$0xff] %v310
      %343 = vst [vmem:[%s172 + $0xd8] sm:$0xff] %v311
      %344 = vst [vmem:[%s172 + $0xe0] sm:$0xff] %v312
      %345 = vst [vmem:[%s172 + $0xe8] sm:$0xff] %v313
      %346 = vst [vmem:[%s172 + $0xf0] sm:$0xff] %v314
      %347 = vst [vmem:[%s172 + $0xf8] sm:$0xff] %v315
      %s348 = smul.u32 32, %s14
      %p349 = scmp.lt.s32.totalorder %s348, 63
      %s350 = scalar_select %p349, %s348, 63
      %s351 = smul.addr %s350, 8
      %s352 = scalar_lea.vmem %s3, %s351
      // Predicated region
      $region33: #{up_forward.5} parent=31 // pred_check
        %p353 = pneg %p100
      $region34: #{up_forward.5} parent=31 // pred_check_branch
        %355 = sbr.rel (%p353) target = $region36
      $region35: #{up_forward.5} parent=31 // pred_region
        %s356 = smul.u32 32, %s14
      $region36: #{up_forward.5} parent=31 // pred_fallthru
        _
    $region32: #{up_forward.5} parent=5 // pred_fallthru
      _
    %p357 = scmp.le.s32.totalorder 2, %s9
    // Predicated region
    $region37: #{up_forward.5} parent=5 // pred_check
      %p358 = pneg %p357
    $region38: #{up_forward.5} parent=5 // pred_check_branch
      %360 = sbr.rel (%p358) target = $region40
    $region39: #{up_forward.5} parent=5 // pred_region
      %s361 = ssub.s32 %s9, 2
      // Predicated region
      $region41: #{up_forward.5} parent=39 // pred_check
        %p362 = pneg %p106
      $region42: #{up_forward.5} parent=39 // pred_check_branch
        %364 = sbr.rel (%p362) target = $region44
      $region43: #{up_forward.5} parent=39 // pred_region
        %s365 = smul.u32 32, %s15
        %p366 = scmp.lt.s32.totalorder %s365, 63
        %s367 = scalar_select %p366, %s365, 63
        %s368 = smul.addr %s367, 8
        %s369 = scalar_lea.vmem %s3, %s368
      $region44: #{up_forward.5} parent=39 // pred_fallthru
        _
    $region40: #{up_forward.5} parent=5 // pred_fallthru
      _
  $region6: #{up_forward.5} parent=0 // loop_footer
    %s13 = sadd.s32 1, %s9
  $region7: #{up_forward.5} parent=0 // loop_footer_branch
    %8 = sbr.rel target = $region3
  $region8: #{up_forward.5} parent=0 // loop_exit
    _

// kernel: up_forward.4
$region0: #{up_forward.4}
  #allocation0 [shape = 'u32[]', space=smem, size = 0x4, offset = 0x4, fixed_abs, tag = 'smem constant byte address 0x4 - core index']
  #allocation1 [shape = 'u32[144,128]{1,0:T(1,128)}', space=vmem, size = 0x12000, scoped, tag = 'internal scratch']
  #allocation2 [shape = 'f32[1,128]{1,0:T(1,128)}', space=vmem, size = 0x200, scoped, tag = 'scratch operand']
  #allocation3 [shape = 'f32[1,128]{1,0:T(1,128)}', space=vmem, size = 0x200, scoped, tag = 'scratch operand']
  %s0 = inlined_call_operand.vmem [shape: f32[512,128], index: 0, kind: input, shape index: {}]
  %s1 = inlined_call_operand.vmem [shape: f32[128,128], index: 1, kind: input, shape index: {}]
  %s2 = inlined_call_operand.vmem [shape: f32[1,128], index: 2, kind: input, shape index: {}]
  %s3 = inlined_call_operand.vmem [shape: f32[1,128], index: 3, kind: input, shape index: {}]
  %s4 = inlined_call_operand.vmem [shape: f32[512,128], index: 4, kind: output, shape index: {0}]
  %s5 = inlined_call_operand.vmem [shape: f32[1,128], index: 5, kind: output, shape index: {1}]
  %s6 = inlined_call_operand.vmem [shape: f32[1,128], index: 6, kind: output, shape index: {2}]
  %7 = xla_tuple %s4, %s5, %s6
  %s8 = sld [smem:[#allocation0]]
  $region73: #{up_forward.4} parent=0
    _
  %s10 = ssub.s32 1, %s8
  %s11 = scalar_select 0, %s10, %s8
  loop: start=0, step=1, limit=4
  $region2: #{up_forward.4} parent=0 // loop_pre_header
    _
  $region3: #{up_forward.4} parent=0 // loop_header
    %s13 = sphi 0, %s17
    %p14 = scmp.ge.s32.totalorder %s13, 4
    %s23 = sphi 0, %s25
    %s26 = sphi 0, %s23
    %s27 = sphi 0, %s26
    %s43 = sphi 0, %s27
    %s47 = sphi 0, %s47
    %s49 = sphi 0, %s47
    %s50 = sphi 0, %s49
    %s64 = sphi 0, %s50
    %s68 = sphi 0, %s68
    %s70 = sphi 0, %s68
    %s71 = sphi 0, %s70
    %s85 = sphi 0, %s71
    %s89 = sphi 0, %s89
    %s91 = sphi 0, %s89
    %s92 = sphi 0, %s91
    %s106 = sphi 0, %s92
    %s112 = sphi 0, %s114
    %s115 = sphi 0, %s112
    %s116 = sphi 0, %s115
    %s132 = sphi 0, %s116
    %s136 = sphi 0, %s136
    %s138 = sphi 0, %s136
    %s139 = sphi 0, %s138
    %s153 = sphi 0, %s139
    %s157 = sphi 0, %s157
    %s159 = sphi 0, %s157
    %s160 = sphi 0, %s159
    %s174 = sphi 0, %s160
  $region4: #{up_forward.4} parent=0 // loop_header_branch
    %16 = sbr.rel (%p14) target = $region8
  $region5: #{up_forward.4} parent=0 // loop_body
    %s18 = ssub.s32 %s13, 1
    %s19 = ssub.s32 %s13, 2
    %s20 = sadd.s32 %s13, 1
    %s21 = ssub.s32 %s13, %s20
    %p22 = scmp.eq.s32.totalorder %s21, 0
    %s24 = sadd.s32 %s23, 1
    %s25 = scalar_select %p22, %s23, %s24
    %p28 = pneg %p22
    %p29 = scmp.eq.s32.totalorder %s13, 1
    %p30 = por %p28, %p29
    %p31 = scmp.ne.s32.totalorder %s23, %s26
    %p32 = scmp.eq.s32.totalorder %s13, 0
    %p33 = por %p31, %p32
    %p34 = scmp.ne.s32.totalorder %s23, %s26
    %p35 = scmp.eq.s32.totalorder %s18, 1
    %p36 = por %p34, %p35
    %p37 = scmp.ne.s32.totalorder %s26, %s27
    %p38 = scmp.eq.s32.totalorder %s18, 0
    %p39 = por %p37, %p38
    %p40 = scmp.ne.s32.totalorder %s26, %s27
    %p41 = scmp.eq.s32.totalorder %s19, 1
    %p42 = por %p40, %p41
    %p44 = scmp.ne.s32.totalorder %s27, %s43
    %p45 = scmp.eq.s32.totalorder %s19, 0
    %p46 = por %p44, %p45
    %s48 = sadd.s32 %s47, 1
    %p51 = scmp.eq.s32.totalorder %s13, 1
    %p52 = scmp.ne.s32.totalorder %s47, %s49
    %p53 = scmp.eq.s32.totalorder %s13, 0
    %p54 = por %p52, %p53
    %p55 = scmp.ne.s32.totalorder %s47, %s49
    %p56 = scmp.eq.s32.totalorder %s18, 1
    %p57 = por %p55, %p56
    %p58 = scmp.ne.s32.totalorder %s49, %s50
    %p59 = scmp.eq.s32.totalorder %s18, 0
    %p60 = por %p58, %p59
    %p61 = scmp.ne.s32.totalorder %s49, %s50
    %p62 = scmp.eq.s32.totalorder %s19, 1
    %p63 = por %p61, %p62
    %p65 = scmp.ne.s32.totalorder %s50, %s64
    %p66 = scmp.eq.s32.totalorder %s19, 0
    %p67 = por %p65, %p66
    %s69 = sadd.s32 %s68, 1
    %p72 = scmp.eq.s32.totalorder %s13, 1
    %p73 = scmp.ne.s32.totalorder %s68, %s70
    %p74 = scmp.eq.s32.totalorder %s13, 0
    %p75 = por %p73, %p74
    %p76 = scmp.ne.s32.totalorder %s68, %s70
    %p77 = scmp.eq.s32.totalorder %s18, 1
    %p78 = por %p76, %p77
    %p79 = scmp.ne.s32.totalorder %s70, %s71
    %p80 = scmp.eq.s32.totalorder %s18, 0
    %p81 = por %p79, %p80
    %p82 = scmp.ne.s32.totalorder %s70, %s71
    %p83 = scmp.eq.s32.totalorder %s19, 1
    %p84 = por %p82, %p83
    %p86 = scmp.ne.s32.totalorder %s71, %s85
    %p87 = scmp.eq.s32.totalorder %s19, 0
    %p88 = por %p86, %p87
    %s90 = sadd.s32 %s89, 1
    %p93 = scmp.eq.s32.totalorder %s13, 1
    %p94 = scmp.ne.s32.totalorder %s89, %s91
    %p95 = scmp.eq.s32.totalorder %s13, 0
    %p96 = por %p94, %p95
    %p97 = scmp.ne.s32.totalorder %s89, %s91
    %p98 = scmp.eq.s32.totalorder %s18, 1
    %p99 = por %p97, %p98
    %p100 = scmp.ne.s32.totalorder %s91, %s92
    %p101 = scmp.eq.s32.totalorder %s18, 0
    %p102 = por %p100, %p101
    %p103 = scmp.ne.s32.totalorder %s91, %s92
    %p104 = scmp.eq.s32.totalorder %s19, 1
    %p105 = por %p103, %p104
    %p107 = scmp.ne.s32.totalorder %s92, %s106
    %p108 = scmp.eq.s32.totalorder %s19, 0
    %p109 = por %p107, %p108
    %s110 = ssub.s32 %s13, %s20
    %p111 = scmp.eq.s32.totalorder %s110, 0
    %s113 = sadd.s32 %s112, 1
    %s114 = scalar_select %p111, %s112, %s113
    %p117 = pneg %p111
    %p118 = scmp.eq.s32.totalorder %s13, 1
    %p119 = por %p117, %p118
    %p120 = scmp.ne.s32.totalorder %s112, %s115
    %p121 = scmp.eq.s32.totalorder %s13, 0
    %p122 = por %p120, %p121
    %p123 = scmp.ne.s32.totalorder %s112, %s115
    %p124 = scmp.eq.s32.totalorder %s18, 1
    %p125 = por %p123, %p124
    %p126 = scmp.ne.s32.totalorder %s115, %s116
    %p127 = scmp.eq.s32.totalorder %s18, 0
    %p128 = por %p126, %p127
    %p129 = scmp.ne.s32.totalorder %s115, %s116
    %p130 = scmp.eq.s32.totalorder %s19, 1
    %p131 = por %p129, %p130
    %p133 = scmp.ne.s32.totalorder %s116, %s132
    %p134 = scmp.eq.s32.totalorder %s19, 0
    %p135 = por %p133, %p134
    %s137 = sadd.s32 %s136, 1
    %p140 = scmp.eq.s32.totalorder %s13, 1
    %p141 = scmp.ne.s32.totalorder %s136, %s138
    %p142 = scmp.eq.s32.totalorder %s13, 0
    %p143 = por %p141, %p142
    %p144 = scmp.ne.s32.totalorder %s136, %s138
    %p145 = scmp.eq.s32.totalorder %s18, 1
    %p146 = por %p144, %p145
    %p147 = scmp.ne.s32.totalorder %s138, %s139
    %p148 = scmp.eq.s32.totalorder %s18, 0
    %p149 = por %p147, %p148
    %p150 = scmp.ne.s32.totalorder %s138, %s139
    %p151 = scmp.eq.s32.totalorder %s19, 1
    %p152 = por %p150, %p151
    %p154 = scmp.ne.s32.totalorder %s139, %s153
    %p155 = scmp.eq.s32.totalorder %s19, 0
    %p156 = por %p154, %p155
    %s158 = sadd.s32 %s157, 1
    %p161 = scmp.eq.s32.totalorder %s13, 1
    %p162 = scmp.ne.s32.totalorder %s157, %s159
    %p163 = scmp.eq.s32.totalorder %s13, 0
    %p164 = por %p162, %p163
    %p165 = scmp.ne.s32.totalorder %s157, %s159
    %p166 = scmp.eq.s32.totalorder %s18, 1
    %p167 = por %p165, %p166
    %p168 = scmp.ne.s32.totalorder %s159, %s160
    %p169 = scmp.eq.s32.totalorder %s18, 0
    %p170 = por %p168, %p169
    %p171 = scmp.ne.s32.totalorder %s159, %s160
    %p172 = scmp.eq.s32.totalorder %s19, 1
    %p173 = por %p171, %p172
    %p175 = scmp.ne.s32.totalorder %s160, %s174
    %p176 = scmp.eq.s32.totalorder %s19, 0
    %p177 = por %p175, %p176
    %p178 = scmp.le.s32.totalorder 1, %s13
    %p179 = scmp.lt.s32.totalorder %s13, 3
    %p180 = pnand %p178, %p179
    %p181 = pneg %p180
    // Predicated region
    $region9: #{up_forward.4} parent=5 // pred_check
      _
    $region10: #{up_forward.4} parent=5 // pred_check_branch
      %183 = sbr.rel (%p180) target = $region12
    $region11: #{up_forward.4} parent=5 // pred_region
      %s184 = ssub.s32 %s13, 1
      // Predicated region
      $region13: #{up_forward.4} parent=11 // pred_check
        %p185 = pneg %p60
      $region14: #{up_forward.4} parent=11 // pred_check_branch
        %187 = sbr.rel (%p185) target = $region16
      $region15: #{up_forward.4} parent=11 // pred_region
        _
      $region16: #{up_forward.4} parent=11 // pred_fallthru
        _
      // Predicated region
      $region17: #{up_forward.4} parent=11 // pred_check
        %p188 = pneg %p81
      $region18: #{up_forward.4} parent=11 // pred_check_branch
        %190 = sbr.rel (%p188) target = $region20
      $region19: #{up_forward.4} parent=11 // pred_region
        _
      $region20: #{up_forward.4} parent=11 // pred_fallthru
        _
      // Predicated region
      $region21: #{up_forward.4} parent=11 // pred_check
        %p191 = pneg %p102
      $region22: #{up_forward.4} parent=11 // pred_check_branch
        %193 = sbr.rel (%p191) target = $region24
      $region23: #{up_forward.4} parent=11 // pred_region
        _
      $region24: #{up_forward.4} parent=11 // pred_fallthru
        _
    $region12: #{up_forward.4} parent=5 // pred_fallthru
      _
    %p194 = scmp.lt.s32.totalorder %s13, 2
    // Predicated region
    $region25: #{up_forward.4} parent=5 // pred_check
      %p195 = pneg %p194
    $region26: #{up_forward.4} parent=5 // pred_check_branch
      %197 = sbr.rel (%p195) target = $region28
    $region27: #{up_forward.4} parent=5 // pred_region
      // Predicated region
      $region29: #{up_forward.4} parent=27 // pred_check
        %p198 = pneg %p33
      $region30: #{up_forward.4} parent=27 // pred_check_branch
        %200 = sbr.rel (%p198) target = $region32
      $region31: #{up_forward.4} parent=27 // pred_region
        %s201 = smul.u32 32, %s13
        %p202 = scmp.lt.s32.totalorder %s201, 63
        %s203 = scalar_select %p202, %s201, 63
        %s204 = smul.addr %s203, 8
        %s205 = scalar_lea.vmem %s0, %s204
        %s206 = smul.u32 32, %s13
      $region32: #{up_forward.4} parent=27 // pred_fallthru
        _
    $region28: #{up_forward.4} parent=5 // pred_fallthru
      _
    %p207 = scmp.le.s32.totalorder 1, %s13
    %p208 = scmp.lt.s32.totalorder %s13, 3
    %p209 = pnand %p207, %p208
    %p210 = pneg %p209
    // Predicated region
    $region33: #{up_forward.4} parent=5 // pred_check
      _
    $region34: #{up_forward.4} parent=5 // pred_check_branch
      %212 = sbr.rel (%p209) target = $region36
    $region35: #{up_forward.4} parent=5 // pred_region
      %s213 = ssub.s32 %s13, 1
      %s214 = smul.u32 32, %s18
      %p215 = scmp.lt.s32.totalorder %s214, 63
      %s216 = scalar_select %p215, %s214, 63
      %s217 = smul.addr %s216, 8
      %s218 = scalar_lea.vmem %s0, %s217
      %p219 = pneg %p39
      %p220 = pneg %p36
      %p221 = pneg %p60
      %p222 = pneg %p57
      %p223 = pneg %p81
      %p224 = pneg %p78
      %p225 = pneg %p102
      %p226 = pneg %p99
      %p227 = pneg %p128
      %p228 = pneg %p125
      %s229 = smul.u32 32, %s18
      %p230 = scmp.lt.s32.totalorder %s229, 63
      %s231 = scalar_select %p230, %s229, 63
      %s232 = smul.addr %s231, 8
      %s233 = scalar_lea.vmem %s4, %s232
      %p234 = pneg %p149
      %p235 = pneg %p146
      %p236 = pneg %p170
      %p237 = pneg %p167
      %s238 = smul.u32 32, %s18
      %p239 = scmp.lt.s32.totalorder %s238, 63
      %s240 = scalar_select %p239, %s238, 63
      %s241 = smul.addr %s240, 8
      %s242 = scalar_lea.vmem %s0, %s241
      %s243 = smul.u32 32, %s18
      %s244 = smul.u32 32, %s18
      %p245 = scmp.lt.s32.totalorder %s244, 63
      %s246 = scalar_select %p245, %s244, 63
      %s247 = smul.addr %s246, 8
      %s248 = scalar_lea.vmem %s4, %s247
      %s249 = smul.u32 32, %s18
      %p250 = scmp.eq.s32.totalorder %s18, 0
      // Predicated region
      $region37: #{up_forward.4} parent=35 // pred_check
        %p251 = pneg %p250
      $region38: #{up_forward.4} parent=35 // pred_check_branch
        %253 = sbr.rel (%p251) target = $region40
      $region39: #{up_forward.4} parent=35 // pred_region
        %254 = vst [vmem:[#allocation2] sm:$0x1] 0.0
        %255 = vst [vmem:[#allocation3] sm:$0x1] 0.0
      $region40: #{up_forward.4} parent=35 // pred_fallthru
        _
      %v256 = vld [vmem:[%s242] sm:$0xff]
      %v257 = vld [vmem:[%s242 + $0x8] sm:$0xff]
      %v258 = vld [vmem:[%s242 + $0x10] sm:$0xff]
      %v259 = vld [vmem:[%s242 + $0x18] sm:$0xff]
      %v260 = vld [vmem:[%s242 + $0x20] sm:$0xff]
      %v261 = vld [vmem:[%s242 + $0x28] sm:$0xff]
      %v262 = vld [vmem:[%s242 + $0x30] sm:$0xff]
      %v263 = vld [vmem:[%s242 + $0x38] sm:$0xff]
      %v264 = vld [vmem:[%s242 + $0x40] sm:$0xff]
      %v265 = vld [vmem:[%s242 + $0x48] sm:$0xff]
      %v266 = vld [vmem:[%s242 + $0x50] sm:$0xff]
      %v267 = vld [vmem:[%s242 + $0x58] sm:$0xff]
      %v268 = vld [vmem:[%s242 + $0x60] sm:$0xff]
      %v269 = vld [vmem:[%s242 + $0x68] sm:$0xff]
      %v270 = vld [vmem:[%s242 + $0x70] sm:$0xff]
      %v271 = vld [vmem:[%s242 + $0x78] sm:$0xff]
      %v272 = vld [vmem:[%s242 + $0x80] sm:$0xff]
      %v273 = vld [vmem:[%s242 + $0x88] sm:$0xff]
      %v274 = vld [vmem:[%s242 + $0x90] sm:$0xff]
      %v275 = vld [vmem:[%s242 + $0x98] sm:$0xff]
      %v276 = vld [vmem:[%s242 + $0xa0] sm:$0xff]
      %v277 = vld [vmem:[%s242 + $0xa8] sm:$0xff]
      %v278 = vld [vmem:[%s242 + $0xb0] sm:$0xff]
      %v279 = vld [vmem:[%s242 + $0xb8] sm:$0xff]
      %v280 = vld [vmem:[%s242 + $0xc0] sm:$0xff]
      %v281 = vld [vmem:[%s242 + $0xc8] sm:$0xff]
      %v282 = vld [vmem:[%s242 + $0xd0] sm:$0xff]
      %v283 = vld [vmem:[%s242 + $0xd8] sm:$0xff]
      %v284 = vld [vmem:[%s242 + $0xe0] sm:$0xff]
      %v285 = vld [vmem:[%s242 + $0xe8] sm:$0xff]
      %v286 = vld [vmem:[%s242 + $0xf0] sm:$0xff]
      %v287 = vld [vmem:[%s242 + $0xf8] sm:$0xff]
      %v288 = vld [vmem:[%s1] sm:$0xff]
      %v289 = vld [vmem:[%s1 + $0x8] sm:$0xff]
      %v290 = vld [vmem:[%s1 + $0x10] sm:$0xff]
      %v291 = vld [vmem:[%s1 + $0x18] sm:$0xff]
      %v292 = vld [vmem:[%s1 + $0x20] sm:$0xff]
      %v293 = vld [vmem:[%s1 + $0x28] sm:$0xff]
      %v294 = vld [vmem:[%s1 + $0x30] sm:$0xff]
      %v295 = vld [vmem:[%s1 + $0x38] sm:$0xff]
      %v296 = vld [vmem:[%s1 + $0x40] sm:$0xff]
      %v297 = vld [vmem:[%s1 + $0x48] sm:$0xff]
      %v298 = vld [vmem:[%s1 + $0x50] sm:$0xff]
      %v299 = vld [vmem:[%s1 + $0x58] sm:$0xff]
      %v300 = vld [vmem:[%s1 + $0x60] sm:$0xff]
      %v301 = vld [vmem:[%s1 + $0x68] sm:$0xff]
      %v302 = vld [vmem:[%s1 + $0x70] sm:$0xff]
      %v303 = vld [vmem:[%s1 + $0x78] sm:$0xff]
      %304 = vmatprep.subr.mxu0 0.0
      %305 = vmatpush1.msra.mxu0 %v288
      %306 = vmatprep.subr.mxu0 0.0
      %307 = vmatpush1.msra.mxu0 %v289
      %308 = vmatprep.subr.mxu0 0.0
      %309 = vmatpush1.msra.mxu0 %v290
      %310 = vmatprep.subr.mxu0 0.0
      %311 = vmatpush1.msra.mxu0 %v291
      %312 = vmatprep.subr.mxu0 0.0
      %313 = vmatpush1.msra.mxu0 %v292
      %314 = vmatprep.subr.mxu0 0.0
      %315 = vmatpush1.msra.mxu0 %v293
      %316 = vmatprep.subr.mxu0 0.0
      %317 = vmatpush1.msra.mxu0 %v294
      %318 = vmatprep.subr.mxu0 0.0
      %319 = vmatpush1.msra.mxu0 %v295
      %320 = vmatprep.subr.mxu0 0.0
      %321 = vmatpush1.msra.mxu0 %v296
      %322 = vmatprep.subr.mxu0 0.0
      %323 = vmatpush1.msra.mxu0 %v297
      %324 = vmatprep.subr.mxu0 0.0
      %325 = vmatpush1.msra.mxu0 %v298
      %326 = vmatprep.subr.mxu0 0.0
      %327 = vmatpush1.msra.mxu0 %v299
      %328 = vmatprep.subr.mxu0 0.0
      %329 = vmatpush1.msra.mxu0 %v300
      %330 = vmatprep.subr.mxu0 0.0
      %331 = vmatpush1.msra.mxu0 %v301
      %332 = vmatprep.subr.mxu0 0.0
      %333 = vmatpush1.msra.mxu0 %v302
      %334 = vmatprep.subr.mxu0 0.0
      %335 = vmatpush1.msra.mxu0 %v303
      %336 = vmatprep.subr.mxu0 0.0
      %337 = vmatpush1.msra.mxu0 0.0
      %338 = vmatprep.subr.mxu0 0.0
      %339 = vmatpush1.msra.mxu0 0.0
      %340 = vmatprep.subr.mxu0 0.0
      %341 = vmatpush1.msra.mxu0 0.0
      %342 = vmatprep.subr.mxu0 0.0
      %343 = vmatpush1.msra.mxu0 0.0
      %344 = vmatprep.subr.mxu0 0.0
      %345 = vmatpush1.msra.mxu0 0.0
      %346 = vmatprep.subr.mxu0 0.0
      %347 = vmatpush1.msra.mxu0 0.0
      %348 = vmatprep.subr.mxu0 0.0
      %349 = vmatpush1.msra.mxu0 0.0
      %350 = vmatprep.subr.mxu0 0.0
      %351 = vmatpush1.msra.mxu0 0.0
      %352 = vmatprep.subr.mxu0 0.0
      %353 = vmatpush1.msra.mxu0 0.0
      %354 = vmatprep.subr.mxu0 0.0
      %355 = vmatpush1.msra.mxu0 0.0
      %356 = vmatprep.subr.mxu0 0.0
      %357 = vmatpush1.msra.mxu0 0.0
      %358 = vmatprep.subr.mxu0 0.0
      %359 = vmatpush1.msra.mxu0 0.0
      %360 = vmatprep.subr.mxu0 0.0
      %361 = vmatpush1.msra.mxu0 0.0
      %362 = vmatprep.subr.mxu0 0.0
      %363 = vmatpush1.msra.mxu0 0.0
      %364 = vmatprep.subr.mxu0 0.0
      %365 = vmatpush1.msra.mxu0 0.0
      %366 = vmatprep.subr.mxu0 0.0
      %367 = vmatpush1.msra.mxu0 0.0
      %368 = vmatprep.mubr.f32.mxu0 0.0
      %369 = vmatmul.mubr.f32.gmra.mrb[0].mxu0 %v256
      %v370 = vpop.f32.mrb[0].mxu0
      %v371 = vadd.f32 0.0, %v370
      %v372 = vpop.f32.mrb[0].mxu0
      %373 = vmatprep.mubr.f32.mxu0 0.0
      %374 = vmatmul.mubr.f32.gmra.mrb[0].mxu0 %v257
      %v375 = vpop.f32.mrb[0].mxu0
      %v376 = vadd.f32 0.0, %v375
      %v377 = vpop.f32.mrb[0].mxu0
      %378 = vmatprep.mubr.f32.mxu0 0.0
      %379 = vmatmul.mubr.f32.gmra.mrb[0].mxu0 %v258
      %v380 = vpop.f32.mrb[0].mxu0
      %v381 = vadd.f32 0.0, %v380
      %v382 = vpop.f32.mrb[0].mxu0
      %383 = vmatprep.mubr.f32.mxu0 0.0
      %384 = vmatmul.mubr.f32.gmra.mrb[0].mxu0 %v259
      %v385 = vpop.f32.mrb[0].mxu0
      %v386 = vadd.f32 0.0, %v385
      %v387 = vpop.f32.mrb[0].mxu0
      %388 = vmatprep.mubr.f32.mxu0 0.0
      %389 = vmatmul.mubr.f32.gmra.mrb[0].mxu0 %v260
      %v390 = vpop.f32.mrb[0].mxu0
      %v391 = vadd.f32 0.0, %v390
      %v392 = vpop.f32.mrb[0].mxu0
      %393 = vmatprep.mubr.f32.mxu0 0.0
      %394 = vmatmul.mubr.f32.gmra.mrb[0].mxu0 %v261
      %v395 = vpop.f32.mrb[0].mxu0
      %v396 = vadd.f32 0.0, %v395
      %v397 = vpop.f32.mrb[0].mxu0
      %398 = vmatprep.mubr.f32.mxu0 0.0
      %399 = vmatmul.mubr.f32.gmra.mrb[0].mxu0 %v262
      %v400 = vpop.f32.mrb[0].mxu0
      %v401 = vadd.f32 0.0, %v400
      %v402 = vpop.f32.mrb[0].mxu0
      %403 = vmatprep.mubr.f32.mxu0 0.0
      %404 = vmatmul.mubr.f32.gmra.mrb[0].mxu0 %v263
      %v405 = vpop.f32.mrb[0].mxu0
      %v406 = vadd.f32 0.0, %v405
      %v407 = vpop.f32.mrb[0].mxu0
      %408 = vmatprep.mubr.f32.mxu0 0.0
      %409 = vmatmul.mubr.f32.gmra.mrb[0].mxu0 %v264
      %v410 = vpop.f32.mrb[0].mxu0
      %v411 = vadd.f32 0.0, %v410
      %v412 = vpop.f32.mrb[0].mxu0
      %413 = vmatprep.mubr.f32.mxu0 0.0
      %414 = vmatmul.mubr.f32.gmra.mrb[0].mxu0 %v265
      %v415 = vpop.f32.mrb[0].mxu0
      %v416 = vadd.f32 0.0, %v415
      %v417 = vpop.f32.mrb[0].mxu0
      %418 = vmatprep.mubr.f32.mxu0 0.0
      %419 = vmatmul.mubr.f32.gmra.mrb[0].mxu0 %v266
      %v420 = vpop.f32.mrb[0].mxu0
      %v421 = vadd.f32 0.0, %v420
      %v422 = vpop.f32.mrb[0].mxu0
      %423 = vmatprep.mubr.f32.mxu0 0.0
      %424 = vmatmul.mubr.f32.gmra.mrb[0].mxu0 %v267
      %v425 = vpop.f32.mrb[0].mxu0
      %v426 = vadd.f32 0.0, %v425
      %v427 = vpop.f32.mrb[0].mxu0
      %428 = vmatprep.mubr.f32.mxu0 0.0
      %429 = vmatmul.mubr.f32.gmra.mrb[0].mxu0 %v268
      %v430 = vpop.f32.mrb[0].mxu0
      %v431 = vadd.f32 0.0, %v430
      %v432 = vpop.f32.mrb[0].mxu0
      %433 = vmatprep.mubr.f32.mxu0 0.0
      %434 = vmatmul.mubr.f32.gmra.mrb[0].mxu0 %v269
      %v435 = vpop.f32.mrb[0].mxu0
      %v436 = vadd.f32 0.0, %v435
      %v437 = vpop.f32.mrb[0].mxu0
      %438 = vmatprep.mubr.f32.mxu0 0.0
      %439 = vmatmul.mubr.f32.gmra.mrb[0].mxu0 %v270
      %v440 = vpop.f32.mrb[0].mxu0
      %v441 = vadd.f32 0.0, %v440
      %v442 = vpop.f32.mrb[0].mxu0
      %443 = vmatprep.mubr.f32.mxu0 0.0
      %444 = vmatmul.mubr.f32.gmra.mrb[0].mxu0 %v271
      %v445 = vpop.f32.mrb[0].mxu0
      %v446 = vadd.f32 0.0, %v445
      %v447 = vpop.f32.mrb[0].mxu0
      %448 = vmatprep.mubr.f32.mxu0 0.0
      %449 = vmatmul.mubr.f32.gmra.mrb[0].mxu0 %v272
      %v450 = vpop.f32.mrb[0].mxu0
      %v451 = vadd.f32 0.0, %v450
      %v452 = vpop.f32.mrb[0].mxu0
      %453 = vmatprep.mubr.f32.mxu0 0.0
      %454 = vmatmul.mubr.f32.gmra.mrb[0].mxu0 %v273
      %v455 = vpop.f32.mrb[0].mxu0
      %v456 = vadd.f32 0.0, %v455
      %v457 = vpop.f32.mrb[0].mxu0
      %458 = vmatprep.mubr.f32.mxu0 0.0
      %459 = vmatmul.mubr.f32.gmra.mrb[0].mxu0 %v274
      %v460 = vpop.f32.mrb[0].mxu0
      %v461 = vadd.f32 0.0, %v460
      %v462 = vpop.f32.mrb[0].mxu0
      %463 = vmatprep.mubr.f32.mxu0 0.0
      %464 = vmatmul.mubr.f32.gmra.mrb[0].mxu0 %v275
      %v465 = vpop.f32.mrb[0].mxu0
      %v466 = vadd.f32 0.0, %v465
      %v467 = vpop.f32.mrb[0].mxu0
      %468 = vmatprep.mubr.f32.mxu0 0.0
      %469 = vmatmul.mubr.f32.gmra.mrb[0].mxu0 %v276
      %v470 = vpop.f32.mrb[0].mxu0
      %v471 = vadd.f32 0.0, %v470
      %v472 = vpop.f32.mrb[0].mxu0
      %473 = vmatprep.mubr.f32.mxu0 0.0
      %474 = vmatmul.mubr.f32.gmra.mrb[0].mxu0 %v277
      %v475 = vpop.f32.mrb[0].mxu0
      %v476 = vadd.f32 0.0, %v475
      %v477 = vpop.f32.mrb[0].mxu0
      %478 = vmatprep.mubr.f32.mxu0 0.0
      %479 = vmatmul.mubr.f32.gmra.mrb[0].mxu0 %v278
      %v480 = vpop.f32.mrb[0].mxu0
      %v481 = vadd.f32 0.0, %v480
      %v482 = vpop.f32.mrb[0].mxu0
      %483 = vmatprep.mubr.f32.mxu0 0.0
      %484 = vmatmul.mubr.f32.gmra.mrb[0].mxu0 %v279
      %v485 = vpop.f32.mrb[0].mxu0
      %v486 = vadd.f32 0.0, %v485
      %v487 = vpop.f32.mrb[0].mxu0
      %488 = vmatprep.mubr.f32.mxu0 0.0
      %489 = vmatmul.mubr.f32.gmra.mrb[0].mxu0 %v280
      %v490 = vpop.f32.mrb[0].mxu0
      %v491 = vadd.f32 0.0, %v490
      %v492 = vpop.f32.mrb[0].mxu0
      %493 = vmatprep.mubr.f32.mxu0 0.0
      %494 = vmatmul.mubr.f32.gmra.mrb[0].mxu0 %v281
      %v495 = vpop.f32.mrb[0].mxu0
      %v496 = vadd.f32 0.0, %v495
      %v497 = vpop.f32.mrb[0].mxu0
      %498 = vmatprep.mubr.f32.mxu0 0.0
      %499 = vmatmul.mubr.f32.gmra.mrb[0].mxu0 %v282
      %v500 = vpop.f32.mrb[0].mxu0
      %v501 = vadd.f32 0.0, %v500
      %v502 = vpop.f32.mrb[0].mxu0
      %503 = vmatprep.mubr.f32.mxu0 0.0
      %504 = vmatmul.mubr.f32.gmra.mrb[0].mxu0 %v283
      %v505 = vpop.f32.mrb[0].mxu0
      %v506 = vadd.f32 0.0, %v505
      %v507 = vpop.f32.mrb[0].mxu0
      %508 = vmatprep.mubr.f32.mxu0 0.0
      %509 = vmatmul.mubr.f32.gmra.mrb[0].mxu0 %v284
      %v510 = vpop.f32.mrb[0].mxu0
      %v511 = vadd.f32 0.0, %v510
      %v512 = vpop.f32.mrb[0].mxu0
      %513 = vmatprep.mubr.f32.mxu0 0.0
      %514 = vmatmul.mubr.f32.gmra.mrb[0].mxu0 %v285
      %v515 = vpop.f32.mrb[0].mxu0
      %v516 = vadd.f32 0.0, %v515
      %v517 = vpop.f32.mrb[0].mxu0
      %518 = vmatprep.mubr.f32.mxu0 0.0
      %519 = vmatmul.mubr.f32.gmra.mrb[0].mxu0 %v286
      %v520 = vpop.f32.mrb[0].mxu0
      %v521 = vadd.f32 0.0, %v520
      %v522 = vpop.f32.mrb[0].mxu0
      %523 = vmatprep.mubr.f32.mxu0 0.0
      %524 = vmatmul.mubr.f32.gmra.mrb[0].mxu0 %v287
      %v525 = vpop.f32.mrb[0].mxu0
      %v526 = vadd.f32 0.0, %v525
      %v527 = vpop.f32.mrb[0].mxu0
      %528 = vdwg.mxu0
      %529 = vst [vmem:[%s248] sm:$0xff] %v371
      %530 = vst [vmem:[%s248 + $0x8] sm:$0xff] %v376
      %531 = vst [vmem:[%s248 + $0x10] sm:$0xff] %v381
      %532 = vst [vmem:[%s248 + $0x18] sm:$0xff] %v386
      %533 = vst [vmem:[%s248 + $0x20] sm:$0xff] %v391
      %534 = vst [vmem:[%s248 + $0x28] sm:$0xff] %v396
      %535 = vst [vmem:[%s248 + $0x30] sm:$0xff] %v401
      %536 = vst [vmem:[%s248 + $0x38] sm:$0xff] %v406
      %537 = vst [vmem:[%s248 + $0x40] sm:$0xff] %v411
      %538 = vst [vmem:[%s248 + $0x48] sm:$0xff] %v416
      %539 = vst [vmem:[%s248 + $0x50] sm:$0xff] %v421
      %540 = vst [vmem:[%s248 + $0x58] sm:$0xff] %v426
      %541 = vst [vmem:[%s248 + $0x60] sm:$0xff] %v431
      %542 = vst [vmem:[%s248 + $0x68] sm:$0xff] %v436
      %543 = vst [vmem:[%s248 + $0x70] sm:$0xff] %v441
      %544 = vst [vmem:[%s248 + $0x78] sm:$0xff] %v446
      %545 = vst [vmem:[%s248 + $0x80] sm:$0xff] %v451
      %546 = vst [vmem:[%s248 + $0x88] sm:$0xff] %v456
      %547 = vst [vmem:[%s248 + $0x90] sm:$0xff] %v461
      %548 = vst [vmem:[%s248 + $0x98] sm:$0xff] %v466
      %549 = vst [vmem:[%s248 + $0xa0] sm:$0xff] %v471
      %550 = vst [vmem:[%s248 + $0xa8] sm:$0xff] %v476
      %551 = vst [vmem:[%s248 + $0xb0] sm:$0xff] %v481
      %552 = vst [vmem:[%s248 + $0xb8] sm:$0xff] %v486
      %553 = vst [vmem:[%s248 + $0xc0] sm:$0xff] %v491
      %554 = vst [vmem:[%s248 + $0xc8] sm:$0xff] %v496
      %555 = vst [vmem:[%s248 + $0xd0] sm:$0xff] %v501
      %556 = vst [vmem:[%s248 + $0xd8] sm:$0xff] %v506
      %557 = vst [vmem:[%s248 + $0xe0] sm:$0xff] %v511
      %558 = vst [vmem:[%s248 + $0xe8] sm:$0xff] %v516
      %559 = vst [vmem:[%s248 + $0xf0] sm:$0xff] %v521
      %560 = vst [vmem:[%s248 + $0xf8] sm:$0xff] %v526
      %v561 = vld [vmem:[#allocation2] sm:$0x1]
      %v562 = vadd.f32 %v371, %v376
      %v563 = vadd.f32 %v562, %v381
      %v564 = vadd.f32 %v563, %v386
      %v565 = vadd.f32 %v564, %v391
      %v566 = vadd.f32 %v565, %v396
      %v567 = vadd.f32 %v566, %v401
      %v568 = vadd.f32 %v567, %v406
      %v569 = vadd.f32 %v568, %v411
      %v570 = vadd.f32 %v569, %v416
      %v571 = vadd.f32 %v570, %v421
      %v572 = vadd.f32 %v571, %v426
      %v573 = vadd.f32 %v572, %v431
      %v574 = vadd.f32 %v573, %v436
      %v575 = vadd.f32 %v574, %v441
      %v576 = vadd.f32 %v575, %v446
      %v577 = vadd.f32 %v576, %v451
      %v578 = vadd.f32 %v577, %v456
      %v579 = vadd.f32 %v578, %v461
      %v580 = vadd.f32 %v579, %v466
      %v581 = vadd.f32 %v580, %v471
      %v582 = vadd.f32 %v581, %v476
      %v583 = vadd.f32 %v582, %v481
      %v584 = vadd.f32 %v583, %v486
      %v585 = vadd.f32 %v584, %v491
      %v586 = vadd.f32 %v585, %v496
      %v587 = vadd.f32 %v586, %v501
      %v588 = vadd.f32 %v587, %v506
      %v589 = vadd.f32 %v588, %v511
      %v590 = vadd.f32 %v589, %v516
      %v591 = vadd.f32 %v590, %v521
      %v592 = vadd.f32 %v591, %v526
      %v593 = vrot.slane %v592, 4
      %v594 = vadd.f32 %v592, %v593
      %v595 = vrot.slane %v594, 2
      %v596 = vadd.f32 %v594, %v595
      %v597 = vrot.slane %v596, 1
      %v598 = vadd.f32 %v596, %v597
      %v599 = vadd.f32 %v561, %v598
      %600 = vst [vmem:[#allocation2] sm:$0x1] %v599
      %v601 = vld [vmem:[#allocation3] sm:$0x1]
      %v602 = vmul.f32 %v371, %v371
      %v603 = vmul.f32 %v376, %v376
      %v604 = vmul.f32 %v381, %v381
      %v605 = vmul.f32 %v386, %v386
      %v606 = vmul.f32 %v391, %v391
      %v607 = vmul.f32 %v396, %v396
      %v608 = vmul.f32 %v401, %v401
      %v609 = vmul.f32 %v406, %v406
      %v610 = vmul.f32 %v411, %v411
      %v611 = vmul.f32 %v416, %v416
      %v612 = vmul.f32 %v421, %v421
      %v613 = vmul.f32 %v426, %v426
      %v614 = vmul.f32 %v431, %v431
      %v615 = vmul.f32 %v436, %v436
      %v616 = vmul.f32 %v441, %v441
      %v617 = vmul.f32 %v446, %v446
      %v618 = vmul.f32 %v451, %v451
      %v619 = vmul.f32 %v456, %v456
      %v620 = vmul.f32 %v461, %v461
      %v621 = vmul.f32 %v466, %v466
      %v622 = vmul.f32 %v471, %v471
      %v623 = vmul.f32 %v476, %v476
      %v624 = vmul.f32 %v481, %v481
      %v625 = vmul.f32 %v486, %v486
      %v626 = vmul.f32 %v491, %v491
      %v627 = vmul.f32 %v496, %v496
      %v628 = vmul.f32 %v501, %v501
      %v629 = vmul.f32 %v506, %v506
      %v630 = vmul.f32 %v511, %v511
      %v631 = vmul.f32 %v516, %v516
      %v632 = vmul.f32 %v521, %v521
      %v633 = vmul.f32 %v526, %v526
      %v634 = vadd.f32 %v602, %v603
      %v635 = vadd.f32 %v634, %v604
      %v636 = vadd.f32 %v635, %v605
      %v637 = vadd.f32 %v636, %v606
      %v638 = vadd.f32 %v637, %v607
      %v639 = vadd.f32 %v638, %v608
      %v640 = vadd.f32 %v639, %v609
      %v641 = vadd.f32 %v640, %v610
      %v642 = vadd.f32 %v641, %v611
      %v643 = vadd.f32 %v642, %v612
      %v644 = vadd.f32 %v643, %v613
      %v645 = vadd.f32 %v644, %v614
      %v646 = vadd.f32 %v645, %v615
      %v647 = vadd.f32 %v646, %v616
      %v648 = vadd.f32 %v647, %v617
      %v649 = vadd.f32 %v648, %v618
      %v650 = vadd.f32 %v649, %v619
      %v651 = vadd.f32 %v650, %v620
      %v652 = vadd.f32 %v651, %v621
      %v653 = vadd.f32 %v652, %v622
      %v654 = vadd.f32 %v653, %v623
      %v655 = vadd.f32 %v654, %v624
      %v656 = vadd.f32 %v655, %v625
      %v657 = vadd.f32 %v656, %v626
      %v658 = vadd.f32 %v657, %v627
      %v659 = vadd.f32 %v658, %v628
      %v660 = vadd.f32 %v659, %v629
      %v661 = vadd.f32 %v660, %v630
      %v662 = vadd.f32 %v661, %v631
      %v663 = vadd.f32 %v662, %v632
      %v664 = vadd.f32 %v663, %v633
      %v665 = vrot.slane %v664, 4
      %v666 = vadd.f32 %v664, %v665
      %v667 = vrot.slane %v666, 2
      %v668 = vadd.f32 %v666, %v667
      %v669 = vrot.slane %v668, 1
      %v670 = vadd.f32 %v668, %v669
      %v671 = vadd.f32 %v601, %v670
      %672 = vst [vmem:[#allocation3] sm:$0x1] %v671
      %p673 = scmp.eq.s32.totalorder %s18, 1
      // Predicated region
      $region41: #{up_forward.4} parent=35 // pred_check
        %p674 = pneg %p673
      $region42: #{up_forward.4} parent=35 // pred_check_branch
        %676 = sbr.rel (%p674) target = $region44
      $region43: #{up_forward.4} parent=35 // pred_region
        %v677 = vld [vmem:[#allocation2] sm:$0x1]
        %v678 = vmul.f32 %v677, 0.001953125
        %v679 = vld [vmem:[#allocation3] sm:$0x1]
        %v680 = vmul.f32 %v679, 0.001953125
        %v681 = vmul.f32 %v678, %v678
        %v682 = vsub.f32 %v680, %v681
        %v683 = vadd.f32 %v682, 1e-05
        %v684 = vrsqrt.pop %v683
        %v685 = vld [vmem:[%s2] sm:$0x1]
        %v686 = vmul.f32 %v685, %v684
        %687 = vst [vmem:[%s5] sm:$0x1] %v686
        %v688 = vld [vmem:[%s3] sm:$0x1]
        %v689 = vmul.f32 %v678, %v686
        %v690 = vsub.f32 %v688, %v689
        %691 = vst [vmem:[%s6] sm:$0x1] %v690
      $region44: #{up_forward.4} parent=35 // pred_fallthru
        _
      %s692 = smul.u32 32, %s18
      %p693 = scmp.lt.s32.totalorder %s692, 63
      %s694 = scalar_select %p693, %s692, 63
      %s695 = smul.addr %s694, 8
      %s696 = scalar_lea.vmem %s4, %s695
      // Predicated region
      $region45: #{up_forward.4} parent=35 // pred_check
        %p697 = pneg %p125
      $region46: #{up_forward.4} parent=35 // pred_check_branch
        %699 = sbr.rel (%p697) target = $region48
      $region47: #{up_forward.4} parent=35 // pred_region
        %s700 = smul.u32 32, %s18
      $region48: #{up_forward.4} parent=35 // pred_fallthru
        _
      // Predicated region
      $region49: #{up_forward.4} parent=35 // pred_check
        %p701 = pneg %p146
      $region50: #{up_forward.4} parent=35 // pred_check_branch
        %703 = sbr.rel (%p701) target = $region52
      $region51: #{up_forward.4} parent=35 // pred_region
        _
      $region52: #{up_forward.4} parent=35 // pred_fallthru
        _
      // Predicated region
      $region53: #{up_forward.4} parent=35 // pred_check
        %p704 = pneg %p167
      $region54: #{up_forward.4} parent=35 // pred_check_branch
        %706 = sbr.rel (%p704) target = $region56
      $region55: #{up_forward.4} parent=35 // pred_region
        _
      $region56: #{up_forward.4} parent=35 // pred_fallthru
        _
      // Predicated region
      $region57: #{up_forward.4} parent=35 // pred_check
        %p707 = pneg %p146
      $region58: #{up_forward.4} parent=35 // pred_check_branch
        %709 = sbr.rel (%p707) target = $region60
      $region59: #{up_forward.4} parent=35 // pred_region
        _
      $region60: #{up_forward.4} parent=35 // pred_fallthru
        _
      // Predicated region
      $region61: #{up_forward.4} parent=35 // pred_check
        %p710 = pneg %p167
      $region62: #{up_forward.4} parent=35 // pred_check_branch
        %712 = sbr.rel (%p710) target = $region64
      $region63: #{up_forward.4} parent=35 // pred_region
        _
      $region64: #{up_forward.4} parent=35 // pred_fallthru
        _
    $region36: #{up_forward.4} parent=5 // pred_fallthru
      _
    %p713 = scmp.le.s32.totalorder 2, %s13
    // Predicated region
    $region65: #{up_forward.4} parent=5 // pred_check
      %p714 = pneg %p713
    $region66: #{up_forward.4} parent=5 // pred_check_branch
      %716 = sbr.rel (%p714) target = $region68
    $region67: #{up_forward.4} parent=5 // pred_region
      %s717 = ssub.s32 %s13, 2
      // Predicated region
      $region69: #{up_forward.4} parent=67 // pred_check
        %p718 = pneg %p131
      $region70: #{up_forward.4} parent=67 // pred_check_branch
        %720 = sbr.rel (%p718) target = $region72
      $region71: #{up_forward.4} parent=67 // pred_region
        %s721 = smul.u32 32, %s19
        %p722 = scmp.lt.s32.totalorder %s721, 63
        %s723 = scalar_select %p722, %s721, 63
        %s724 = smul.addr %s723, 8
        %s725 = scalar_lea.vmem %s4, %s724
      $region72: #{up_forward.4} parent=67 // pred_fallthru
        _
    $region68: #{up_forward.4} parent=5 // pred_fallthru
      _
  $region6: #{up_forward.4} parent=0 // loop_footer
    %s17 = sadd.s32 1, %s13
  $region7: #{up_forward.4} parent=0 // loop_footer_branch
    %12 = sbr.rel target = $region3
  $region8: #{up_forward.4} parent=0 // loop_exit
    _

</llo_original>
